<compile_context>
chip_gen: v7x
topology: tpu7x:2x2x1
jax: 0.10.0
libtpu: 0.0.40
codegen_flags: <defaults>
</compile_context>

<pallas_src>
import functools

import jax
import jax.numpy as jnp
from jax.experimental import pallas as pl
from jax.experimental.pallas import tpu as pltpu


def _round_up(x, m):
    return (x + m - 1) // m * m


# Conservative double-buffered tile budget (fits default scoped VMEM on
# v5e (16 MiB is tight, so we stay <= 20 MiB and raise the limit to 32 MiB),
# v6e (32 MiB default / 128 MiB physical) and v7x (32 MiB default / 64 MiB).
_VMEM_TILE_BUDGET = 20 * 1024 * 1024


def _apply_activation(y, activation):
    if activation == "relu":
        return jnp.maximum(y, 0.0)
    if activation == "tanh":
        return jnp.tanh(y)
    if activation == "sigmoid":
        return jax.nn.sigmoid(y)
    if activation == "leaky":
        return jnp.where(y >= 0.0, y, 0.01 * y)   # nn.LeakyReLU default slope
    return y


# --------------------------------------------------------------------------
# Kernels.  x tile (TM, TK) bf16, weight tile (TK, TN) bf16 (pre-transposed),
# f32 accumulation; epilogue: y = acc * (1/sigma) + bias, optional activation.
# --------------------------------------------------------------------------
def _linear_kernel_acc(inv_sigma_ref, x_ref, w_ref, b_ref, o_ref, acc_ref, *,
                       activation):
    """Grid (M, N, K): K is the last (reduction) axis; f32 VMEM accumulator."""
    k = pl.program_id(2)

    @pl.when(k == 0)
    def _init():
        acc_ref[...] = jnp.zeros_like(acc_ref)

    acc_ref[...] += jnp.dot(x_ref[...], w_ref[...],
                            preferred_element_type=jnp.float32)

    @pl.when(k == pl.num_programs(2) - 1)
    def _epilogue():
        y = acc_ref[...] * inv_sigma_ref[0, 0] + b_ref[...]
        o_ref[...] = _apply_activation(y, activation).astype(o_ref.dtype)


def _linear_kernel_single_k(inv_sigma_ref, x_ref, w_ref, b_ref, o_ref, *,
                            activation):
    """Grid (M, N): the whole K dimension fits in one tile; no scratch."""
    y = jnp.dot(x_ref[...], w_ref[...], preferred_element_type=jnp.float32)
    y = y * inv_sigma_ref[0, 0] + b_ref[...]
    o_ref[...] = _apply_activation(y, activation).astype(o_ref.dtype)


# --------------------------------------------------------------------------
# Tile selection.
# --------------------------------------------------------------------------
def _choose_tiles(B, Inp, Outp):
    TK = next(t for t in (1024, 512, 256, 128) if t <= Inp and Inp % t == 0)
    TN = next(t for t in (512, 256, 128) if t <= Outp and Outp % t == 0)
    kgrid = Inp // TK

    def fits(tm):
        x_b = 2 * tm * TK * 2            # bf16 x, double buffered
        w_b = 2 * TK * TN * 2            # bf16 weight, double buffered
        o_b = 2 * tm * TN * 4            # f32 output, double buffered
        acc = tm * TN * 4 if kgrid > 1 else 0
        b_b = 2 * TN * 4
        return x_b + w_b + o_b + acc + b_b <= _VMEM_TILE_BUDGET

    # Prefer a TM that covers the entire padded batch so every weight block is
    # DMA'd from HBM exactly once; otherwise step down.
    Bp_full = _round_up(B, 16)
    TM = 16
    for tm in (Bp_full, 1024, 512, 256, 128, 64, 32, 16):
        if tm <= Bp_full and tm % 16 == 0 and fits(tm):
            TM = tm
            break
    Bp = _round_up(B, TM)

    # v7x megacore: keep >= 2 blocks on a "parallel" grid axis when both M and
    # N would otherwise collapse to a single block (no effect on v5e/v6e).
    if Bp // TM == 1 and Outp // TN == 1 and Outp % 256 == 0:
        TN = Outp // 2

    return TM, TN, TK, Bp


# --------------------------------------------------------------------------
# Forward wrapper around pallas_call.  Expects the weight already prepared as
# a bf16 (Inp, Outp) = padded (In, Out) array and bias padded to (1, Outp).
# --------------------------------------------------------------------------
def linear_layer_forward(x, w_t_bf16, bias_pad, inv_sigma, out_features,
                         activation):
    B, In = x.shape
    Inp, Outp = w_t_bf16.shape
    Out = out_features

    TM, TN, TK, Bp = _choose_tiles(B, Inp, Outp)
    kgrid = Inp // TK

    xb = x.astype(jnp.bfloat16)
    if (Bp, Inp) != (B, In):
        xb = jnp.pad(xb, ((0, Bp - B), (0, Inp - In)))
    inv_sigma_arr = jnp.asarray(inv_sigma, jnp.float32).reshape(1, 1)

    smem_spec = pl.BlockSpec(memory_space=pltpu.MemorySpace.SMEM)

    if kgrid == 1:
        grid = (Bp // TM, Outp // TN)
        kernel = functools.partial(_linear_kernel_single_k,
                                   activation=activation)
        in_specs = [
            smem_spec,                                         # 1/sigma scalar
            pl.BlockSpec((TM, TK), lambda i, j: (i, 0)),       # x tile
            pl.BlockSpec((TK, TN), lambda i, j: (0, j)),       # weight (K, N)
            pl.BlockSpec((1, TN), lambda i, j: (0, j)),        # bias tile
        ]
        out_spec = pl.BlockSpec((TM, TN), lambda i, j: (i, j))
        scratch = []
        dims = ("parallel", "parallel")
    else:
        grid = (Bp // TM, Outp // TN, kgrid)
        kernel = functools.partial(_linear_kernel_acc, activation=activation)
        in_specs = [
            smem_spec,                                         # 1/sigma scalar
            pl.BlockSpec((TM, TK), lambda i, j, k: (i, k)),    # x tile
            pl.BlockSpec((TK, TN), lambda i, j, k: (k, j)),    # weight (K, N)
            pl.BlockSpec((1, TN), lambda i, j, k: (0, j)),     # bias tile
        ]
        out_spec = pl.BlockSpec((TM, TN), lambda i, j, k: (i, j))
        scratch = [pltpu.VMEM((TM, TN), jnp.float32)]
        dims = ("parallel", "parallel", "arbitrary")

    out = pl.pallas_call(
        kernel,
        out_shape=jax.ShapeDtypeStruct((Bp, Outp), jnp.float32),
        grid=grid,
        in_specs=in_specs,
        out_specs=out_spec,
        scratch_shapes=scratch,
        compiler_params=pltpu.CompilerParams(
            dimension_semantics=dims,
            vmem_limit_bytes=32 * 1024 * 1024),
    )(inv_sigma_arr, xb, w_t_bf16, bias_pad)

    if (Bp, Outp) != (B, Out):
        out = out[:B, :Out]        # only pay for the slice when padding exists
    return out


# --------------------------------------------------------------------------
# Spectral norm (torch.nn.utils.spectral_norm, one power iteration as done on
# a training-mode forward).  Only sigma is computed here; the 1/sigma scale is
# fused into the kernel epilogue.
# --------------------------------------------------------------------------
def spectral_norm_sigma(weight, u, n_power_iterations=1, eps=1e-12):
    w = weight                                    # (Out, In)
    v = None
    for _ in range(n_power_iterations):
        v = w.T @ u
        v = v / jnp.maximum(jnp.linalg.norm(v), eps)
        wv = w @ v
        u = wv / jnp.maximum(jnp.linalg.norm(wv), eps)
    sigma = jnp.dot(u, w @ v)
    return sigma, u


def _forward_impl(x, weight_f32, w_t_bf16, bias_pad, u, *, activation,
                  use_spectral_norm, out_features):
    """Jitted forward: power iteration + fused linear kernel. Returns (y, u)."""
    if use_spectral_norm:
        sigma, u_new = spectral_norm_sigma(weight_f32, u)
        inv_sigma = 1.0 / sigma
    else:
        inv_sigma = jnp.float32(1.0)
        u_new = u
    y = linear_layer_forward(x, w_t_bf16, bias_pad, inv_sigma, out_features,
                             activation)
    return y, u_new


class LinearLayer:
    """JAX/Pallas port of nets.networks.LinearLayer (default config)."""

    def __init__(self, in_channels, out_channels, activation="none",
                 norm="none", spectral_norm=True, dropout=0, key=None):
        # TODO(synk): instance-/batch-/layer-norm and dropout branches of the
        # PyTorch module are unused in the default config and are not ported.
        assert norm == "none" and dropout == 0
        key = key if key is not None else jax.random.PRNGKey(0)
        kw, kb, ku = jax.random.split(key, 3)
        bound = 1.0 / (in_channels ** 0.5)        # nn.Linear default init
        self.weight = jax.random.uniform(
            kw, (out_channels, in_channels), jnp.float32, -bound, bound)
        self.bias = jax.random.uniform(
            kb, (out_channels,), jnp.float32, -bound, bound)
        self.spectral_norm = spectral_norm
        self.activation = activation
        self.out_features = out_channels

        # spectral_norm u vector: normal_(0,1) then normalized
        u = jax.random.normal(ku, (out_channels,), jnp.float32)
        self.u = u / jnp.maximum(jnp.linalg.norm(u), 1e-12)

        # Hoisted weight/bias prep (done once): bf16, padded, transposed to
        # (Inp, Outp) so the kernel RHS is already in canonical (K, N) layout.
        Inp = _round_up(in_channels, 128)
        Outp = _round_up(out_channels, 128)
        w_t = jnp.zeros((Inp, Outp), jnp.bfloat16)
        self.w_t_bf16 = w_t.at[:in_channels, :out_channels].set(
            self.weight.T.astype(jnp.bfloat16))
        self.bias_pad = jnp.zeros((1, Outp), jnp.float32).at[
            0, :out_channels].set(self.bias)

        # Jitted forward; spectral-norm `u` is threaded functionally.
        self._forward = jax.jit(functools.partial(
            _forward_impl,
            activation=self.activation,
            use_spectral_norm=self.spectral_norm,
            out_features=self.out_features))

    def __call__(self, x):
        y, u_new = self._forward(x, self.weight, self.w_t_bf16, self.bias_pad,
                                 self.u)
        self.u = u_new                             # power-iteration state update
        return y


# --------------------------------------------------------------------------
if __name__ == "__main__":
    key = jax.random.PRNGKey(0)
    k_in, k_layer = jax.random.split(key)

    B, IN, OUT = 8, 32, 16
    x = jax.random.normal(k_in, (B, IN), jnp.float32)

    layer = LinearLayer(IN, OUT, activation="none", norm="none",
                        spectral_norm=True, dropout=0, key=k_layer)

    u_before = layer.u                             # state used by this forward
    y = jax.block_until_ready(layer(x))
    assert y.shape == (B, OUT)

    # Plain-JAX reference of the same math: same u, same bf16 rounding of the
    # matmul inputs, same fused 1/sigma scale.
    # (bf16 rounding is a documented deviation from PyTorch's f32 nn.Linear.)
    sigma_ref, _ = spectral_norm_sigma(layer.weight, u_before)
    inv_sigma_ref = 1.0 / sigma_ref
    xb = x.astype(jnp.bfloat16).astype(jnp.float32)
    wb = layer.weight.astype(jnp.bfloat16).astype(jnp.float32)
    y_ref = jnp.dot(xb, wb.T) * inv_sigma_ref + layer.bias

    err = float(jnp.max(jnp.abs(y - y_ref)))
    assert jnp.allclose(y, y_ref, atol=2e-3, rtol=2e-3), err

    print("KERNEL_OK")
</pallas_src>

<mosaic_0001>
module attributes {stable_mosaic.version = 11 : i64} {
  func.func @_linear_kernel_single_k(%arg0: i32, %arg1: i32, %arg2: memref<1x1xf32, #tpu.memory_space<smem>>, %arg3: memref<16x128xbf16, #tpu.memory_space<vmem>>, %arg4: memref<128x128xbf16, #tpu.memory_space<vmem>>, %arg5: memref<1x128xf32, #tpu.memory_space<vmem>>, %arg6: memref<16x128xf32, #tpu.memory_space<vmem>>) attributes {dimension_semantics = [#tpu.dimension_semantics<parallel>, #tpu.dimension_semantics<parallel>], iteration_bounds = array<i64: 1, 1>, scalar_prefetch = 0 : i64, scratch_operands = 0 : i64, tpu.core_type = #tpu.core_type<tc>, window_params = [{transform_indices = @transform_0, window_bounds = array<i64: 1, 1>}, {transform_indices = @transform_1, window_bounds = array<i64: 16, 128>}, {transform_indices = @transform_2, window_bounds = array<i64: 128, 128>}, {transform_indices = @transform_3, window_bounds = array<i64: 1, 128>}, {transform_indices = @transform_4, window_bounds = array<i64: 16, 128>}]} {
    %c0 = arith.constant 0 : index
    %c0_0 = arith.constant 0 : index
    %0 = vector.load %arg3[%c0, %c0_0] : memref<16x128xbf16, #tpu.memory_space<vmem>>, vector<16x128xbf16>
    %c0_1 = arith.constant 0 : index
    %c0_2 = arith.constant 0 : index
    %1 = vector.load %arg4[%c0_1, %c0_2] : memref<128x128xbf16, #tpu.memory_space<vmem>>, vector<128x128xbf16>
    %cst = arith.constant dense<0.000000e+00> : vector<16x128xf32>
    %2 = tpu.matmul %0, %1, %cst {dimension_numbers = #tpu.dot_dimension_numbers<[1], [0], [0], [1], [0, 0, 1, 1], [], []>} : vector<16x128xbf16>, vector<128x128xbf16>, vector<16x128xf32> -> vector<16x128xf32>
    %c0_3 = arith.constant 0 : index
    %c0_4 = arith.constant 0 : index
    %3 = memref.load %arg2[%c0_3, %c0_4] : memref<1x1xf32, #tpu.memory_space<smem>>
    %4 = vector.broadcast %3 : f32 to vector<16x128xf32>
    %5 = arith.mulf %2, %4 : vector<16x128xf32>
    %c0_5 = arith.constant 0 : index
    %c0_6 = arith.constant 0 : index
    %6 = vector.load %arg5[%c0_5, %c0_6] : memref<1x128xf32, #tpu.memory_space<vmem>>, vector<1x128xf32>
    %7 = vector.broadcast %6 : vector<1x128xf32> to vector<16x128xf32>
    %8 = arith.addf %5, %7 : vector<16x128xf32>
    %c0_7 = arith.constant 0 : index
    %c0_8 = arith.constant 0 : index
    %9 = vector.load %arg6[%c0_7, %c0_8] : memref<16x128xf32, #tpu.memory_space<vmem>>, vector<16x128xf32>
    tpu.vector_store %arg6[%c0_7, %c0_8], %8 {strides = array<i32>} : memref<16x128xf32, #tpu.memory_space<vmem>>, vector<16x128xf32>,
    return
  }
  func.func @transform_0(%arg0: i32, %arg1: i32) -> (i32, i32) {
    %c0_i32 = arith.constant 0 : i32
    %c0_i32_0 = arith.constant 0 : i32
    %c0_i32_1 = arith.constant 0 : i32
    return %c0_i32, %c0_i32_0 : i32, i32
  }
  func.func @transform_1(%arg0: i32, %arg1: i32) -> (i32, i32) {
    %c0_i32 = arith.constant 0 : i32
    %c0_i32_0 = arith.constant 0 : i32
    return %arg0, %c0_i32 : i32, i32
  }
  func.func @transform_2(%arg0: i32, %arg1: i32) -> (i32, i32) {
    %c0_i32 = arith.constant 0 : i32
    %c0_i32_0 = arith.constant 0 : i32
    return %c0_i32, %arg1 : i32, i32
  }
  func.func @transform_3(%arg0: i32, %arg1: i32) -> (i32, i32) {
    %c0_i32 = arith.constant 0 : i32
    %c0_i32_0 = arith.constant 0 : i32
    return %c0_i32, %arg1 : i32, i32
  }
  func.func @transform_4(%arg0: i32, %arg1: i32) -> (i32, i32) {
    %c0_i32 = arith.constant 0 : i32
    return %arg0, %arg1 : i32, i32
  }
}

</mosaic_0001>

<llo_original>
// kernel: _forward_impl.1
$region0: #{_forward_impl.1}
  #allocation0 [shape = 'u32[]', space=smem, size = 0x4, offset = 0x4, fixed_abs, tag = 'smem constant byte address 0x4 - core index']
  #allocation1 [shape = 'u32[144,128]{1,0:T(1,128)}', space=vmem, size = 0x12000, scoped, tag = 'internal scratch']
  #allocation2 [shape = 'f32[1,1]{1,0:T(1,128)S(6)}', space=smem, size = 0x200, scoped, tag = 'scoped memory for _forward_impl.1']
  %s0 = inlined_call_operand.<no memory space> [shape: f32[1,1], index: 0, kind: input, shape index: {}]
  %s1 = inlined_call_operand.vmem [shape: bf16[16,128], index: 1, kind: input, shape index: {}]
  %s2 = inlined_call_operand.vmem [shape: bf16[128,128], index: 2, kind: input, shape index: {}]
  %s3 = inlined_call_operand.vmem [shape: f32[1,128], index: 3, kind: input, shape index: {}]
  %s4 = inlined_call_operand.vmem [shape: f32[16,128], index: 4, kind: output, shape index: {}]
  %s5 = sld [smem:[#allocation0]]
  $region26: #{_forward_impl.1} parent=0
    _
  %s7 = ssub.s32 1, %s5
  %s8 = scalar_select 0, %s7, %s5
  %9 = sst [smem:[#allocation2]] %s0
  // Predicated region
  $region2: #{_forward_impl.1} parent=0 // pred_check
    _
  $region3: #{_forward_impl.1} parent=0 // pred_check_branch
    %11 = sbr.rel (0) target = $region5
  $region4: #{_forward_impl.1} parent=0 // pred_region
    _
  $region5: #{_forward_impl.1} parent=0 // pred_fallthru
    _
  // Predicated region
  $region6: #{_forward_impl.1} parent=0 // pred_check
    _
  $region7: #{_forward_impl.1} parent=0 // pred_check_branch
    %13 = sbr.rel (0) target = $region9
  $region8: #{_forward_impl.1} parent=0 // pred_region
    _
  $region9: #{_forward_impl.1} parent=0 // pred_fallthru
    _
  // Predicated region
  $region10: #{_forward_impl.1} parent=0 // pred_check
    _
  $region11: #{_forward_impl.1} parent=0 // pred_check_branch
    %15 = sbr.rel (0) target = $region13
  $region12: #{_forward_impl.1} parent=0 // pred_region
    _
  $region13: #{_forward_impl.1} parent=0 // pred_fallthru
    _
  // Predicated region
  $region14: #{_forward_impl.1} parent=0 // pred_check
    _
  $region15: #{_forward_impl.1} parent=0 // pred_check_branch
    %17 = sbr.rel (0) target = $region17
  $region16: #{_forward_impl.1} parent=0 // pred_region
    _
  $region17: #{_forward_impl.1} parent=0 // pred_fallthru
    _
  %v19 = vld [vmem:[%s1] sm:$0xf]
  %v20 = vld [vmem:[%s1 + $0x4] sm:$0xf]
  %v21 = vld [vmem:[%s2] sm:$0xf]
  %v22 = vld [vmem:[%s2 + $0x4] sm:$0xf]
  %v23 = vld [vmem:[%s2 + $0x8] sm:$0xf]
  %v24 = vld [vmem:[%s2 + $0xc] sm:$0xf]
  %v25 = vld [vmem:[%s2 + $0x10] sm:$0xf]
  %v26 = vld [vmem:[%s2 + $0x14] sm:$0xf]
  %v27 = vld [vmem:[%s2 + $0x18] sm:$0xf]
  %v28 = vld [vmem:[%s2 + $0x1c] sm:$0xf]
  %v29 = vld [vmem:[%s2 + $0x20] sm:$0xf]
  %v30 = vld [vmem:[%s2 + $0x24] sm:$0xf]
  %v31 = vld [vmem:[%s2 + $0x28] sm:$0xf]
  %v32 = vld [vmem:[%s2 + $0x2c] sm:$0xf]
  %v33 = vld [vmem:[%s2 + $0x30] sm:$0xf]
  %v34 = vld [vmem:[%s2 + $0x34] sm:$0xf]
  %v35 = vld [vmem:[%s2 + $0x38] sm:$0xf]
  %v36 = vld [vmem:[%s2 + $0x3c] sm:$0xf]
  %v39 = vunpack.c.l.b16 %v19
  %v40 = vunpack.c.l.b16 %v20
  %v41 = vpack.c.b16 %v40, %v39
  %v59 = vunpack.c.l.b16 %v21
  %v60 = vunpack.c.l.b16 %v22
  %v61 = vunpack.c.l.b16 %v23
  %v62 = vunpack.c.l.b16 %v24
  %v63 = vunpack.c.l.b16 %v25
  %v64 = vunpack.c.l.b16 %v26
  %v65 = vunpack.c.l.b16 %v27
  %v66 = vunpack.c.l.b16 %v28
  %v67 = vunpack.c.l.b16 %v29
  %v68 = vunpack.c.l.b16 %v30
  %v69 = vunpack.c.l.b16 %v31
  %v70 = vunpack.c.l.b16 %v32
  %v71 = vunpack.c.l.b16 %v33
  %v72 = vunpack.c.l.b16 %v34
  %v73 = vunpack.c.l.b16 %v35
  %v74 = vunpack.c.l.b16 %v36
  %v75 = vpack.c.b16 %v60, %v59
  %v76 = vpack.c.b16 %v62, %v61
  %v77 = vpack.c.b16 %v64, %v63
  %v78 = vpack.c.b16 %v66, %v65
  %v79 = vpack.c.b16 %v68, %v67
  %v80 = vpack.c.b16 %v70, %v69
  %v81 = vpack.c.b16 %v72, %v71
  %v82 = vpack.c.b16 %v74, %v73
  %91 = vmatprep.subr.bf16.mxu0 0
  %92 = vmatpush1.bf16.msra.mxu0 %v75
  %93 = vmatprep.subr.bf16.mxu0 0
  %94 = vmatpush1.bf16.msra.mxu0 %v76
  %95 = vmatprep.subr.bf16.mxu0 0
  %96 = vmatpush1.bf16.msra.mxu0 %v77
  %97 = vmatprep.subr.bf16.mxu0 0
  %98 = vmatpush1.bf16.msra.mxu0 %v78
  %99 = vmatprep.subr.bf16.mxu0 0
  %100 = vmatpush1.bf16.msra.mxu0 %v79
  %101 = vmatprep.subr.bf16.mxu0 0
  %102 = vmatpush1.bf16.msra.mxu0 %v80
  %103 = vmatprep.subr.bf16.mxu0 0
  %104 = vmatpush1.bf16.msra.mxu0 %v81
  %105 = vmatprep.subr.bf16.mxu0 0
  %106 = vmatpush1.bf16.msra.mxu0 %v82
  %107 = vmatprep.subr.bf16.mxu0 0
  %108 = vmatpush1.bf16.msra.mxu0 0
  %109 = vmatprep.subr.bf16.mxu0 0
  %110 = vmatpush1.bf16.msra.mxu0 0
  %111 = vmatprep.subr.bf16.mxu0 0
  %112 = vmatpush1.bf16.msra.mxu0 0
  %113 = vmatprep.subr.bf16.mxu0 0
  %114 = vmatpush1.bf16.msra.mxu0 0
  %115 = vmatprep.subr.bf16.mxu0 0
  %116 = vmatpush1.bf16.msra.mxu0 0
  %117 = vmatprep.subr.bf16.mxu0 0
  %118 = vmatpush1.bf16.msra.mxu0 0
  %119 = vmatprep.subr.bf16.mxu0 0
  %120 = vmatpush1.bf16.msra.mxu0 0
  %121 = vmatprep.subr.bf16.mxu0 0
  %122 = vmatpush1.bf16.msra.mxu0 0
  %123 = vmatprep.mubr.bf16.mxu0 0
  %124 = vmatmul.mubr.bf16.gmra.mrb[0].mxu0 %v41
  %v125 = vpop.f32.mrb[0].mxu0
  %v126 = vadd.f32 0.0, %v125
  %v127 = vpop.f32.mrb[0].mxu0
  %v128 = vpop.f32.mrb[0].mxu0
  %v129 = vadd.f32 0.0, %v128
  %v130 = vpop.f32.mrb[0].mxu0
  %131 = vdwg.mxu0
  %s132 = sld [smem:[#allocation2]]
  %v133 = vstv %s132
  %v134 = vmul.f32 %v126, %v133
  %v135 = vmul.f32 %v129, %v133
  %v136 = vld [vmem:[%s3] sm:$0x1]
  %v138 = vlaneseq
  %v139 = vshrl.u32 %v138, 7
  %v140 = vsub.s32 0, %v139
  %v141 = vrot.slane %v136, %v140
  %v143 = vadd.f32 %v134, %v141
  %v144 = vadd.f32 %v135, %v141
  %145 = vst [vmem:[%s4] sm:$0xff] %v143
  %146 = vst [vmem:[%s4 + $0x8] sm:$0xff] %v144
  // Predicated region
  $region18: #{_forward_impl.1} parent=0 // pred_check
    _
  $region19: #{_forward_impl.1} parent=0 // pred_check_branch
    %148 = sbr.rel (0) target = $region21
  $region20: #{_forward_impl.1} parent=0 // pred_region
    _
  $region21: #{_forward_impl.1} parent=0 // pred_fallthru
    _
  // Predicated region
  $region22: #{_forward_impl.1} parent=0 // pred_check
    _
  $region23: #{_forward_impl.1} parent=0 // pred_check_branch
    %150 = sbr.rel (0) target = $region25
  $region24: #{_forward_impl.1} parent=0 // pred_region
    _
  $region25: #{_forward_impl.1} parent=0 // pred_fallthru
    _

</llo_original>
